<compile_context>
chip_gen: v5e
topology: v5e:2x2
jax: 0.10.0
libtpu: 0.0.40
codegen_flags: <defaults>
</compile_context>

<pallas_src>
import jax
import jax.numpy as jnp
import numpy as np
from jax import lax
from jax.experimental import pallas as pl
from jax.experimental.pallas import tpu as pltpu


def _downsample_kernel(xa_ref, xb_ref, sel_ref, rw_ref, w_ref, b_ref, o_ref):
    # xa_ref : (1, 2*th, Wp, C)  main rows of the top/left-padded NHWC input
    # xb_ref : (1, 1,    Wp, C)  1-row bottom halo for this tile
    # sel_ref: (th, Wout, Wp)    0/1 column-window selection (resident constant)
    # rw_ref : (1, Wout)         1/cnt_w  (count_include_pad=False, f32)
    # w_ref  : (C, Cout)         1x1-conv weight (transposed from OIHW)
    # b_ref  : (1, Cout)         bias (f32)
    # o_ref  : (1, th, Wout, Cout)
    _, R, Wp, C = xa_ref.shape                # R = 2*th
    _, th, Wout, Cout = o_ref.shape

    xa = xa_ref[0]                            # (2*th, Wp, C)
    xb = xb_ref[0]                            # (1, Wp, C)

    # ---- 3x3 / stride-2 row reduction (leading-dim slices only) ------------
    a = xa.reshape(th, 2, Wp, C)
    evens = a[:, 0]                           # rows 0, 2, ..., 2*th-2
    odds = a[:, 1]                            # rows 1, 3, ..., 2*th-1
    if th > 1:
        nxt = jnp.concatenate([evens[1:], xb], axis=0)   # rows 2, 4, ..., 2*th
    else:
        nxt = xb
    rowsum = evens + odds + nxt               # (th, Wp, C)

    # ---- column reduction as a batched matmul with the 0/1 window matrix ---
    mxu_dt = sel_ref.dtype                    # f32, or bf16 on v6e/v7x
    colsum = jnp.einsum('how,hwc->hoc', sel_ref[...], rowsum.astype(mxu_dt),
                        preferred_element_type=jnp.float32)   # (th, Wout, C)

    # count_include_pad=False divisor, separable: 1/cnt_h (rows) * 1/cnt_w (cols)
    t = pl.program_id(1)
    gi = t * th + lax.broadcasted_iota(jnp.int32, (th, 1), 0)  # global out row
    rh = jnp.where(gi == 0, 0.5, 1.0 / 3.0)                    # (th, 1) f32
    pooled = colsum * rh[:, :, None] * rw_ref[...][:, :, None]  # (th, Wout, C)

    # ---- 1x1 conv: one flattened MXU matmul --------------------------------
    pooled2 = pooled.reshape(th * Wout, C).astype(w_ref.dtype)
    y = jnp.dot(pooled2, w_ref[...], preferred_element_type=jnp.float32)
    y = y + b_ref[...]                        # (1, Cout) broadcasts
    o_ref[0] = y.reshape(th, Wout, Cout).astype(o_ref.dtype)


def _pick_tile_h(Hout, Wp, Wout, C, Cout, itemsize=4, budget_bytes=2 << 20):
    """Largest divisor of Hout whose per-tile working set fits the budget."""
    per_row = itemsize * (2 * Wp * C        # input rows (block A)
                          + Wout * Wp       # sel row
                          + Wp * C          # rowsum row
                          + 2 * Wout * C    # colsum + pooled rows
                          + Wout * Cout)    # output row
    th = int(max(1, min(Hout, budget_bytes // max(per_row, 1))))
    while Hout % th:
        th -= 1
    if th == Hout and Hout > 1:               # keep >=2 H-tiles (megacore / 2 TCs)
        th = Hout // 2
        while Hout % th:
            th -= 1
    return th


def downsample2d(x_nchw, w_oihw, bias, *, tile_h=None, mxu_dtype=None):
    """Pallas implementation of Downsample2d.forward for NCHW inputs.

    mxu_dtype=jnp.bfloat16 feeds the MXU bf16 operands (f32 accumulation),
    recommended on v6e/v7x; default (None) keeps f32 operands.
    """
    N, C, H, W = x_nchw.shape
    Cout = w_oihw.shape[0]
    assert H % 2 == 0 and W % 2 == 0, "kernel assumes even spatial dims"
    Hout, Wout = H // 2, W // 2
    Wp = W + 1                                 # left pad only; right pad never read

    th = _pick_tile_h(Hout, Wp, Wout, C, Cout) if tile_h is None else tile_h
    assert Hout % th == 0, "tile_h must divide Hout"
    nT = Hout // th

    cdt = jnp.float32 if mxu_dtype is None else mxu_dtype

    # Glue: NCHW -> NHWC, top/left zero-pad, parameter reshapes.
    x = jnp.transpose(x_nchw, (0, 2, 3, 1))
    xp = jnp.pad(x, ((0, 0), (1, 0), (1, 0), (0, 0)))          # (N, H+1, W+1, C)

    # Static pooling metadata (host-side numpy, DMA'd once, resident in VMEM).
    o_idx = np.arange(Wout)[:, None]
    w_idx = np.arange(Wp)[None, :]
    sel2 = ((w_idx >= 2 * o_idx) & (w_idx <= 2 * o_idx + 2)).astype(np.float32)
    sel3 = jnp.asarray(np.broadcast_to(sel2, (th, Wout, Wp)), dtype=cdt)
    cnt_w = (np.minimum(2 * np.arange(Wout) + 2, W)
             - np.maximum(2 * np.arange(Wout), 1) + 1).astype(np.float32)
    rw = jnp.asarray(1.0 / cnt_w).reshape(1, Wout)

    w2d = jnp.transpose(w_oihw[:, :, 0, 0], (1, 0)).astype(cdt)   # (C, Cout)
    b2d = bias.astype(jnp.float32).reshape(1, Cout)

    out_nhwc = pl.pallas_call(
        _downsample_kernel,
        out_shape=jax.ShapeDtypeStruct((N, Hout, Wout, Cout), x_nchw.dtype),
        grid=(N, nT),
        in_specs=[
            # main rows of the tile: padded rows [2*t*th, 2*t*th + 2*th)
            pl.BlockSpec((1, 2 * th, Wp, C), lambda n, t: (n, t, 0, 0)),
            # 1-row halo: padded row 2*(t+1)*th (block size 1 -> element index)
            pl.BlockSpec((1, 1, Wp, C),
                         lambda n, t: (n, (t + 1) * (2 * th), 0, 0)),
            pl.BlockSpec((th, Wout, Wp), lambda n, t: (0, 0, 0)),
            pl.BlockSpec((1, Wout), lambda n, t: (0, 0)),
            pl.BlockSpec((C, Cout), lambda n, t: (0, 0)),
            pl.BlockSpec((1, Cout), lambda n, t: (0, 0)),
        ],
        out_specs=pl.BlockSpec((1, th, Wout, Cout), lambda n, t: (n, t, 0, 0)),
        compiler_params=pltpu.CompilerParams(
            dimension_semantics=("parallel", "parallel"),
            vmem_limit_bytes=32 * 1024 * 1024),
    )(xp, xp, sel3, rw, w2d, b2d)

    return jnp.transpose(out_nhwc, (0, 3, 1, 2))      # back to NCHW


def _ref_downsample(x_nchw, w_oihw, bias):
    """Pure-JAX reference (matches PyTorch AvgPool2d + 1x1 Conv2d)."""
    N, C, H, W = x_nchw.shape
    Hout, Wout = (H - 1) // 2 + 1, (W - 1) // 2 + 1
    xp = jnp.pad(x_nchw, ((0, 0), (0, 0), (1, 1), (1, 1)))
    vp = jnp.pad(jnp.ones((H, W), x_nchw.dtype), ((1, 1), (1, 1)))
    s = jnp.zeros((N, C, Hout, Wout), x_nchw.dtype)
    c = jnp.zeros((Hout, Wout), x_nchw.dtype)
    for di in range(3):
        for dj in range(3):
            s = s + xp[:, :, di:di + 2 * Hout:2, dj:dj + 2 * Wout:2]
            c = c + vp[di:di + 2 * Hout:2, dj:dj + 2 * Wout:2]
    pooled = s / c[None, None]
    out = jnp.einsum('nchw,dc->ndhw', pooled, w_oihw[:, :, 0, 0])
    return out + bias[None, :, None, None]


if __name__ == "__main__":
    key = jax.random.PRNGKey(0)
    kx, kw, kb = jax.random.split(key, 3)

    # Module config: dim=4, dim_out=8  (dim != dim_out -> 1x1 conv with bias)
    N, C, H, W = 2, 4, 16, 16
    Cout = 8

    x = jax.random.normal(kx, (N, C, H, W), jnp.float32)
    # Conv2d weight is OIHW = (Cout, C, 1, 1).
    w = jax.random.normal(kw, (Cout, C, 1, 1), jnp.float32) * 0.1
    b = jax.random.normal(kb, (Cout,), jnp.float32) * 0.1

    ref = _ref_downsample(x, w, b)

    # Default (f32 MXU operands) path — exact check against the reference.
    out = downsample2d(x, w, b)                      # grid = (N=2, H-tiles=2)
    jax.block_until_ready(out)
    np.testing.assert_allclose(np.asarray(out), np.asarray(ref),
                               rtol=1e-5, atol=1e-5)

    # bf16-operand / f32-accumulate path (v6e/v7x suggestion) — looser check.
    out_bf16 = downsample2d(x, w, b, mxu_dtype=jnp.bfloat16)
    jax.block_until_ready(out_bf16)
    np.testing.assert_allclose(np.asarray(out_bf16), np.asarray(ref),
                               rtol=2e-2, atol=2e-2)

    print("KERNEL_OK")
</pallas_src>

<mosaic_0001>
module attributes {stable_mosaic.version = 11 : i64} {
  func.func @_downsample_kernel(%arg0: i32, %arg1: i32, %arg2: memref<1x8x17x4xf32, #tpu.memory_space<vmem>>, %arg3: memref<1x1x17x4xf32, #tpu.memory_space<vmem>>, %arg4: memref<4x8x17xf32, #tpu.memory_space<vmem>>, %arg5: memref<1x8xf32, #tpu.memory_space<vmem>>, %arg6: memref<4x8xf32, #tpu.memory_space<vmem>>, %arg7: memref<1x8xf32, #tpu.memory_space<vmem>>, %arg8: memref<1x4x8x8xf32, #tpu.memory_space<vmem>>) attributes {dimension_semantics = [#tpu.dimension_semantics<parallel>, #tpu.dimension_semantics<parallel>], iteration_bounds = array<i64: 2, 2>, scalar_prefetch = 0 : i64, scratch_operands = 0 : i64, tpu.core_type = #tpu.core_type<tc>, window_params = [{transform_indices = @transform_0, window_bounds = array<i64: 1, 8, 17, 4>}, {transform_indices = @transform_1, window_bounds = array<i64: 1, 1, 17, 4>}, {pipeline_mode = #tpu.pipeline_mode<synchronous>, transform_indices = @transform_2, window_bounds = array<i64: 4, 8, 17>}, {pipeline_mode = #tpu.pipeline_mode<synchronous>, transform_indices = @transform_3, window_bounds = array<i64: 1, 8>}, {pipeline_mode = #tpu.pipeline_mode<synchronous>, transform_indices = @transform_4, window_bounds = array<i64: 4, 8>}, {pipeline_mode = #tpu.pipeline_mode<synchronous>, transform_indices = @transform_5, window_bounds = array<i64: 1, 8>}, {transform_indices = @transform_6, window_bounds = array<i64: 1, 4, 8, 8>}]} {
    %c0 = arith.constant 0 : index
    %c0_0 = arith.constant 0 : index
    %c0_1 = arith.constant 0 : index
    %c0_2 = arith.constant 0 : index
    %0 = vector.load %arg2[%c0, %c0_0, %c0_1, %c0_2] : memref<1x8x17x4xf32, #tpu.memory_space<vmem>>, vector<1x8x17x4xf32>
    %1 = vector.shape_cast %0 : vector<1x8x17x4xf32> to vector<8x17x4xf32>
    %c0_3 = arith.constant 0 : index
    %c0_4 = arith.constant 0 : index
    %c0_5 = arith.constant 0 : index
    %c0_6 = arith.constant 0 : index
    %2 = vector.load %arg3[%c0_3, %c0_4, %c0_5, %c0_6] : memref<1x1x17x4xf32, #tpu.memory_space<vmem>>, vector<1x1x17x4xf32>
    %3 = vector.shape_cast %2 : vector<1x1x17x4xf32> to vector<1x17x4xf32>
    %4 = vector.shape_cast %1 : vector<8x17x4xf32> to vector<4x2x17x4xf32>
    %5 = vector.extract_strided_slice %4 {offsets = [0, 0, 0, 0], sizes = [4, 1, 17, 4], strides = [1, 1, 1, 1]} : vector<4x2x17x4xf32> to vector<4x1x17x4xf32>
    %6 = vector.shape_cast %5 : vector<4x1x17x4xf32> to vector<4x17x4xf32>
    %7 = vector.extract_strided_slice %4 {offsets = [0, 1, 0, 0], sizes = [4, 1, 17, 4], strides = [1, 1, 1, 1]} : vector<4x2x17x4xf32> to vector<4x1x17x4xf32>
    %8 = vector.shape_cast %7 : vector<4x1x17x4xf32> to vector<4x17x4xf32>
    %9 = vector.extract_strided_slice %6 {offsets = [1, 0, 0], sizes = [3, 17, 4], strides = [1, 1, 1]} : vector<4x17x4xf32> to vector<3x17x4xf32>
    %10 = tpu.concatenate %9, %3 in 0 : vector<3x17x4xf32>, vector<1x17x4xf32> -> vector<4x17x4xf32>
    %11 = arith.addf %6, %8 : vector<4x17x4xf32>
    %12 = arith.addf %11, %10 : vector<4x17x4xf32>
    %c0_7 = arith.constant 0 : index
    %c0_8 = arith.constant 0 : index
    %c0_9 = arith.constant 0 : index
    %13 = vector.load %arg4[%c0_7, %c0_8, %c0_9] : memref<4x8x17xf32, #tpu.memory_space<vmem>>, vector<4x8x17xf32>
    "tpu.trace_start"() <{level = 10 : i32, message = "how,hwc->hoc"}> : () -> ()
    %cst = arith.constant dense<0.000000e+00> : vector<4x8x4xf32>
    %14 = tpu.matmul %13, %12, %cst {dimension_numbers = #tpu.dot_dimension_numbers<[2], [1], [1], [2], [0, 0, 0, 1, 1, 2], [0], [0]>} : vector<4x8x17xf32>, vector<4x17x4xf32>, vector<4x8x4xf32> -> vector<4x8x4xf32>
    "tpu.trace_stop"() : () -> ()
    %c4_i32 = arith.constant 4 : i32
    %15 = arith.muli %arg1, %c4_i32 : i32
    %16 = tpu.iota {dimensions = array<i32: 0>} : vector<4x1xi32>
    %17 = vector.broadcast %15 : i32 to vector<4x1xi32>
    %18 = arith.addi %17, %16 : vector<4x1xi32>
    %c0_i32 = arith.constant 0 : i32
    %19 = vector.broadcast %c0_i32 : i32 to vector<4x1xi32>
    %20 = arith.cmpi eq, %18, %19 : vector<4x1xi32>
    %cst_10 = arith.constant 5.000000e-01 : f32
    %cst_11 = arith.constant 0.333333343 : f32
    %21 = vector.broadcast %cst_10 : f32 to vector<4x1xf32>
    %22 = vector.broadcast %cst_11 : f32 to vector<4x1xf32>
    %23 = arith.select %20, %21, %22 : vector<4x1xi1>, vector<4x1xf32>
    %24 = vector.shape_cast %23 : vector<4x1xf32> to vector<4x1x1xf32>
    %25 = vector.broadcast %24 : vector<4x1x1xf32> to vector<4x8x4xf32>
    %26 = arith.mulf %14, %25 : vector<4x8x4xf32>
    %c0_12 = arith.constant 0 : index
    %c0_13 = arith.constant 0 : index
    %27 = vector.load %arg5[%c0_12, %c0_13] : memref<1x8xf32, #tpu.memory_space<vmem>>, vector<1x8xf32>
    %28 = vector.shape_cast %27 : vector<1x8xf32> to vector<1x8x1xf32>
    %29 = vector.broadcast %28 : vector<1x8x1xf32> to vector<4x8x4xf32>
    %30 = arith.mulf %26, %29 : vector<4x8x4xf32>
    %31 = vector.shape_cast %30 : vector<4x8x4xf32> to vector<32x4xf32>
    %c0_14 = arith.constant 0 : index
    %c0_15 = arith.constant 0 : index
    %32 = vector.load %arg6[%c0_14, %c0_15] : memref<4x8xf32, #tpu.memory_space<vmem>>, vector<4x8xf32>
    %cst_16 = arith.constant dense<0.000000e+00> : vector<32x8xf32>
    %33 = tpu.matmul %31, %32, %cst_16 {dimension_numbers = #tpu.dot_dimension_numbers<[1], [0], [0], [1], [0, 0, 1, 1], [], []>} : vector<32x4xf32>, vector<4x8xf32>, vector<32x8xf32> -> vector<32x8xf32>
    %c0_17 = arith.constant 0 : index
    %c0_18 = arith.constant 0 : index
    %34 = vector.load %arg7[%c0_17, %c0_18] : memref<1x8xf32, #tpu.memory_space<vmem>>, vector<1x8xf32>
    %35 = vector.broadcast %34 : vector<1x8xf32> to vector<32x8xf32>
    %36 = arith.addf %33, %35 : vector<32x8xf32>
    %37 = vector.shape_cast %36 : vector<32x8xf32> to vector<4x8x8xf32>
    %c0_19 = arith.constant 0 : index
    %c0_20 = arith.constant 0 : index
    %c0_21 = arith.constant 0 : index
    %c0_22 = arith.constant 0 : index
    %38 = vector.load %arg8[%c0_19, %c0_20, %c0_21, %c0_22] : memref<1x4x8x8xf32, #tpu.memory_space<vmem>>, vector<1x4x8x8xf32>
    %39 = vector.shape_cast %38 : vector<1x4x8x8xf32> to vector<4x8x8xf32>
    %40 = vector.shape_cast %37 : vector<4x8x8xf32> to vector<1x4x8x8xf32>
    tpu.vector_store %arg8[%c0_19, %c0_20, %c0_21, %c0_22], %40 {strides = array<i32>} : memref<1x4x8x8xf32, #tpu.memory_space<vmem>>, vector<1x4x8x8xf32>,
    return
  }
  func.func @transform_0(%arg0: i32, %arg1: i32) -> (i32, i32, i32, i32) {
    %c0_i32 = arith.constant 0 : i32
    %c0_i32_0 = arith.constant 0 : i32
    %c0_i32_1 = arith.constant 0 : i32
    return %arg0, %arg1, %c0_i32, %c0_i32_0 : i32, i32, i32, i32
  }
  func.func @transform_1(%arg0: i32, %arg1: i32) -> (i32, i32, i32, i32) {
    %c1_i32 = arith.constant 1 : i32
    %0 = arith.addi %arg1, %c1_i32 : i32
    %c8_i32 = arith.constant 8 : i32
    %1 = arith.muli %0, %c8_i32 : i32
    %c0_i32 = arith.constant 0 : i32
    %c0_i32_0 = arith.constant 0 : i32
    %c0_i32_1 = arith.constant 0 : i32
    return %arg0, %1, %c0_i32, %c0_i32_0 : i32, i32, i32, i32
  }
  func.func @transform_2(%arg0: i32, %arg1: i32) -> (i32, i32, i32) {
    %c0_i32 = arith.constant 0 : i32
    %c0_i32_0 = arith.constant 0 : i32
    %c0_i32_1 = arith.constant 0 : i32
    %c0_i32_2 = arith.constant 0 : i32
    return %c0_i32, %c0_i32_0, %c0_i32_1 : i32, i32, i32
  }
  func.func @transform_3(%arg0: i32, %arg1: i32) -> (i32, i32) {
    %c0_i32 = arith.constant 0 : i32
    %c0_i32_0 = arith.constant 0 : i32
    %c0_i32_1 = arith.constant 0 : i32
    return %c0_i32, %c0_i32_0 : i32, i32
  }
  func.func @transform_4(%arg0: i32, %arg1: i32) -> (i32, i32) {
    %c0_i32 = arith.constant 0 : i32
    %c0_i32_0 = arith.constant 0 : i32
    %c0_i32_1 = arith.constant 0 : i32
    return %c0_i32, %c0_i32_0 : i32, i32
  }
  func.func @transform_5(%arg0: i32, %arg1: i32) -> (i32, i32) {
    %c0_i32 = arith.constant 0 : i32
    %c0_i32_0 = arith.constant 0 : i32
    %c0_i32_1 = arith.constant 0 : i32
    return %c0_i32, %c0_i32_0 : i32, i32
  }
  func.func @transform_6(%arg0: i32, %arg1: i32) -> (i32, i32, i32, i32) {
    %c0_i32 = arith.constant 0 : i32
    %c0_i32_0 = arith.constant 0 : i32
    %c0_i32_1 = arith.constant 0 : i32
    return %arg0, %arg1, %c0_i32, %c0_i32_0 : i32, i32, i32, i32
  }
}

</mosaic_0001>

<llo_original>
// kernel: tpu_custom_call.1
$region0: #{tpu_custom_call.1}
  #allocation0 [shape = 'u32[]', space=smem, size = 0x4, offset = 0x4, fixed_abs, tag = 'smem constant byte address 0x4 - core index']
  #allocation1 [shape = 'u32[72,128]{1,0:T(1,128)}', space=vmem, size = 0x9000, scoped, tag = 'internal scratch']
  %s0 = inlined_call_operand.vmem [shape: f32[2,17,17,4], index: 0, kind: input, shape index: {}]
  %s1 = inlined_call_operand.vmem [shape: f32[2,17,17,4], index: 1, kind: input, shape index: {}]
  %s2 = inlined_call_operand.vmem [shape: f32[4,8,17], index: 2, kind: input, shape index: {}]
  %s3 = inlined_call_operand.vmem [shape: f32[1,8], index: 3, kind: input, shape index: {}]
  %s4 = inlined_call_operand.vmem [shape: f32[4,8], index: 4, kind: input, shape index: {}]
  %s5 = inlined_call_operand.vmem [shape: f32[1,8], index: 5, kind: input, shape index: {}]
  %s6 = inlined_call_operand.hbm [shape: f32[2,8,8,8], index: 6, kind: output, shape index: {}]
  %s7 = sld [smem:[#allocation0]]
  $region57: #{tpu_custom_call.1} parent=0
    _
  %s9 = ssub.s32 1, %s7
  %s10 = scalar_select 0, %s9, %s7
  $region1: #{tpu_custom_call.1} parent=0
    #allocation2 [shape = 'u8[32768]{0}', space=vmem, size = 0x8000, scoped, tag = 'output window, operand 0']
    #allocation3 [shape = 's32[2]{0}', space=sflag, size = 0x8, scoped, tag = 'scoped memory for tpu_custom_call.1']
    %11 = vsyncpa [#allocation3], 0
    %s12 = scalar_lea.sflag [#allocation3], 1
    %13 = vsyncpa %s12, 0
    loop: start=0, step=1, limit=6
    $region2: #{tpu_custom_call.1} parent=1 // loop_pre_header
      _
    $region3: #{tpu_custom_call.1} parent=1 // loop_header
      %s15 = sphi 0, %s19
      %p16 = scmp.ge.s32.totalorder %s15, 6
      %s22 = sphi 0, %s34
      %s23 = sphi 0, %s30
      %s24 = sphi 0, %s22
      %s25 = sphi 0, %s23
      %s26 = sphi 0, %s24
      %s27 = sphi 0, %s25
      %s39 = sphi 0, %s41
      %s42 = sphi 0, %s39
      %s43 = sphi 0, %s42
      %s59 = sphi 0, %s43
      %s71 = sphi 0, %s73
      %s74 = sphi 0, %s71
      %s75 = sphi 0, %s74
      %s91 = sphi 0, %s75
      %s95 = sphi 0, %s95
      %s97 = sphi 0, %s95
      %s98 = sphi 0, %s97
      %s112 = sphi 0, %s98
      %s116 = sphi 0, %s116
      %s118 = sphi 0, %s116
      %s119 = sphi 0, %s118
      %s133 = sphi 0, %s119
      %s137 = sphi 0, %s137
      %s139 = sphi 0, %s137
      %s140 = sphi 0, %s139
      %s154 = sphi 0, %s140
      %s158 = sphi 0, %s158
      %s160 = sphi 0, %s158
      %s161 = sphi 0, %s160
      %s175 = sphi 0, %s161
      %s183 = sphi 0, %s185
      %s186 = sphi 0, %s183
      %s187 = sphi 0, %s186
      %s203 = sphi 0, %s187
    $region4: #{tpu_custom_call.1} parent=1 // loop_header_branch
      %18 = sbr.rel (%p16) target = $region8
    $region5: #{tpu_custom_call.1} parent=1 // loop_body
      %s20 = ssub.s32 %s15, 1
      %s21 = ssub.s32 %s15, 2
      %s28 = sadd.s32 1, %s23
      %p29 = scmp.ge.s32.totalorder %s28, 2
      %s30 = scalar_select %p29, 0, %s28
      %s31 = sadd.s32 1, %s22
      %s32 = scalar_select %p29, %s31, %s22
      %p33 = scmp.ge.s32.totalorder %s32, 2
      %s34 = scalar_select %p33, 0, %s32
      %s35 = ssub.s32 %s22, %s34
      %s36 = ssub.s32 %s23, %s30
      %s37 = sor.u32 %s35, %s36
      %p38 = scmp.eq.s32.totalorder %s37, 0
      %s40 = sadd.s32 %s39, 1
      %s41 = scalar_select %p38, %s39, %s40
      %p44 = pneg %p38
      %p45 = scmp.eq.s32.totalorder %s15, 3
      %p46 = por %p44, %p45
      %p47 = scmp.ne.s32.totalorder %s39, %s42
      %p48 = scmp.eq.s32.totalorder %s15, 0
      %p49 = por %p47, %p48
      %p50 = scmp.ne.s32.totalorder %s39, %s42
      %p51 = scmp.eq.s32.totalorder %s20, 3
      %p52 = por %p50, %p51
      %p53 = scmp.ne.s32.totalorder %s42, %s43
      %p54 = scmp.eq.s32.totalorder %s20, 0
      %p55 = por %p53, %p54
      %p56 = scmp.ne.s32.totalorder %s42, %s43
      %p57 = scmp.eq.s32.totalorder %s21, 3
      %p58 = por %p56, %p57
      %p60 = scmp.ne.s32.totalorder %s43, %s59
      %p61 = scmp.eq.s32.totalorder %s21, 0
      %p62 = por %p60, %p61
      %s63 = sadd.s32 %s23, 1
      %s64 = smul.u32 %s63, 8
      %s65 = sadd.s32 %s30, 1
      %s66 = smul.u32 %s65, 8
      %s67 = ssub.s32 %s22, %s34
      %s68 = ssub.s32 %s64, %s66
      %s69 = sor.u32 %s67, %s68
      %p70 = scmp.eq.s32.totalorder %s69, 0
      %s72 = sadd.s32 %s71, 1
      %s73 = scalar_select %p70, %s71, %s72
      %p76 = pneg %p70
      %p77 = scmp.eq.s32.totalorder %s15, 3
      %p78 = por %p76, %p77
      %p79 = scmp.ne.s32.totalorder %s71, %s74
      %p80 = scmp.eq.s32.totalorder %s15, 0
      %p81 = por %p79, %p80
      %p82 = scmp.ne.s32.totalorder %s71, %s74
      %p83 = scmp.eq.s32.totalorder %s20, 3
      %p84 = por %p82, %p83
      %p85 = scmp.ne.s32.totalorder %s74, %s75
      %p86 = scmp.eq.s32.totalorder %s20, 0
      %p87 = por %p85, %p86
      %p88 = scmp.ne.s32.totalorder %s74, %s75
      %p89 = scmp.eq.s32.totalorder %s21, 3
      %p90 = por %p88, %p89
      %p92 = scmp.ne.s32.totalorder %s75, %s91
      %p93 = scmp.eq.s32.totalorder %s21, 0
      %p94 = por %p92, %p93
      %s96 = sadd.s32 %s95, 1
      %p99 = scmp.eq.s32.totalorder %s15, 3
      %p100 = scmp.ne.s32.totalorder %s95, %s97
      %p101 = scmp.eq.s32.totalorder %s15, 0
      %p102 = por %p100, %p101
      %p103 = scmp.ne.s32.totalorder %s95, %s97
      %p104 = scmp.eq.s32.totalorder %s20, 3
      %p105 = por %p103, %p104
      %p106 = scmp.ne.s32.totalorder %s97, %s98
      %p107 = scmp.eq.s32.totalorder %s20, 0
      %p108 = por %p106, %p107
      %p109 = scmp.ne.s32.totalorder %s97, %s98
      %p110 = scmp.eq.s32.totalorder %s21, 3
      %p111 = por %p109, %p110
      %p113 = scmp.ne.s32.totalorder %s98, %s112
      %p114 = scmp.eq.s32.totalorder %s21, 0
      %p115 = por %p113, %p114
      %s117 = sadd.s32 %s116, 1
      %p120 = scmp.eq.s32.totalorder %s15, 3
      %p121 = scmp.ne.s32.totalorder %s116, %s118
      %p122 = scmp.eq.s32.totalorder %s15, 0
      %p123 = por %p121, %p122
      %p124 = scmp.ne.s32.totalorder %s116, %s118
      %p125 = scmp.eq.s32.totalorder %s20, 3
      %p126 = por %p124, %p125
      %p127 = scmp.ne.s32.totalorder %s118, %s119
      %p128 = scmp.eq.s32.totalorder %s20, 0
      %p129 = por %p127, %p128
      %p130 = scmp.ne.s32.totalorder %s118, %s119
      %p131 = scmp.eq.s32.totalorder %s21, 3
      %p132 = por %p130, %p131
      %p134 = scmp.ne.s32.totalorder %s119, %s133
      %p135 = scmp.eq.s32.totalorder %s21, 0
      %p136 = por %p134, %p135
      %s138 = sadd.s32 %s137, 1
      %p141 = scmp.eq.s32.totalorder %s15, 3
      %p142 = scmp.ne.s32.totalorder %s137, %s139
      %p143 = scmp.eq.s32.totalorder %s15, 0
      %p144 = por %p142, %p143
      %p145 = scmp.ne.s32.totalorder %s137, %s139
      %p146 = scmp.eq.s32.totalorder %s20, 3
      %p147 = por %p145, %p146
      %p148 = scmp.ne.s32.totalorder %s139, %s140
      %p149 = scmp.eq.s32.totalorder %s20, 0
      %p150 = por %p148, %p149
      %p151 = scmp.ne.s32.totalorder %s139, %s140
      %p152 = scmp.eq.s32.totalorder %s21, 3
      %p153 = por %p151, %p152
      %p155 = scmp.ne.s32.totalorder %s140, %s154
      %p156 = scmp.eq.s32.totalorder %s21, 0
      %p157 = por %p155, %p156
      %s159 = sadd.s32 %s158, 1
      %p162 = scmp.eq.s32.totalorder %s15, 3
      %p163 = scmp.ne.s32.totalorder %s158, %s160
      %p164 = scmp.eq.s32.totalorder %s15, 0
      %p165 = por %p163, %p164
      %p166 = scmp.ne.s32.totalorder %s158, %s160
      %p167 = scmp.eq.s32.totalorder %s20, 3
      %p168 = por %p166, %p167
      %p169 = scmp.ne.s32.totalorder %s160, %s161
      %p170 = scmp.eq.s32.totalorder %s20, 0
      %p171 = por %p169, %p170
      %p172 = scmp.ne.s32.totalorder %s160, %s161
      %p173 = scmp.eq.s32.totalorder %s21, 3
      %p174 = por %p172, %p173
      %p176 = scmp.ne.s32.totalorder %s161, %s175
      %p177 = scmp.eq.s32.totalorder %s21, 0
      %p178 = por %p176, %p177
      %s179 = ssub.s32 %s22, %s34
      %s180 = ssub.s32 %s23, %s30
      %s181 = sor.u32 %s179, %s180
      %p182 = scmp.eq.s32.totalorder %s181, 0
      %s184 = sadd.s32 %s183, 1
      %s185 = scalar_select %p182, %s183, %s184
      %p188 = pneg %p182
      %p189 = scmp.eq.s32.totalorder %s15, 3
      %p190 = por %p188, %p189
      %p191 = scmp.ne.s32.totalorder %s183, %s186
      %p192 = scmp.eq.s32.totalorder %s15, 0
      %p193 = por %p191, %p192
      %p194 = scmp.ne.s32.totalorder %s183, %s186
      %p195 = scmp.eq.s32.totalorder %s20, 3
      %p196 = por %p194, %p195
      %p197 = scmp.ne.s32.totalorder %s186, %s187
      %p198 = scmp.eq.s32.totalorder %s20, 0
      %p199 = por %p197, %p198
      %p200 = scmp.ne.s32.totalorder %s186, %s187
      %p201 = scmp.eq.s32.totalorder %s21, 3
      %p202 = por %p200, %p201
      %p204 = scmp.ne.s32.totalorder %s187, %s203
      %p205 = scmp.eq.s32.totalorder %s21, 0
      %p206 = por %p204, %p205
      %p207 = scmp.le.s32.totalorder 1, %s15
      %p208 = scmp.lt.s32.totalorder %s15, 5
      %p209 = pnand %p207, %p208
      %p210 = pneg %p209
      // Predicated region
      $region9: #{tpu_custom_call.1} parent=5 // pred_check
        _
      $region10: #{tpu_custom_call.1} parent=5 // pred_check_branch
        %212 = sbr.rel (%p209) target = $region12
      $region11: #{tpu_custom_call.1} parent=5 // pred_region
        %s213 = ssub.s32 %s15, 1
        // Predicated region
        $region13: #{tpu_custom_call.1} parent=11 // pred_check
          %p214 = pneg %p108
        $region14: #{tpu_custom_call.1} parent=11 // pred_check_branch
          %216 = sbr.rel (%p214) target = $region16
        $region15: #{tpu_custom_call.1} parent=11 // pred_region
          _
        $region16: #{tpu_custom_call.1} parent=11 // pred_fallthru
          _
        // Predicated region
        $region17: #{tpu_custom_call.1} parent=11 // pred_check
          %p217 = pneg %p129
        $region18: #{tpu_custom_call.1} parent=11 // pred_check_branch
          %219 = sbr.rel (%p217) target = $region20
        $region19: #{tpu_custom_call.1} parent=11 // pred_region
          _
        $region20: #{tpu_custom_call.1} parent=11 // pred_fallthru
          _
        // Predicated region
        $region21: #{tpu_custom_call.1} parent=11 // pred_check
          %p220 = pneg %p150
        $region22: #{tpu_custom_call.1} parent=11 // pred_check_branch
          %222 = sbr.rel (%p220) target = $region24
        $region23: #{tpu_custom_call.1} parent=11 // pred_region
          _
        $region24: #{tpu_custom_call.1} parent=11 // pred_fallthru
          _
        // Predicated region
        $region25: #{tpu_custom_call.1} parent=11 // pred_check
          %p223 = pneg %p171
        $region26: #{tpu_custom_call.1} parent=11 // pred_check_branch
          %225 = sbr.rel (%p223) target = $region28
        $region27: #{tpu_custom_call.1} parent=11 // pred_region
          _
        $region28: #{tpu_custom_call.1} parent=11 // pred_fallthru
          _
      $region12: #{tpu_custom_call.1} parent=5 // pred_fallthru
        _
      %p226 = scmp.lt.s32.totalorder %s15, 4
      // Predicated region
      $region29: #{tpu_custom_call.1} parent=5 // pred_check
        %p227 = pneg %p226
      $region30: #{tpu_custom_call.1} parent=5 // pred_check_branch
        %229 = sbr.rel (%p227) target = $region32
      $region31: #{tpu_custom_call.1} parent=5 // pred_region
        // Predicated region
        $region33: #{tpu_custom_call.1} parent=31 // pred_check
          %p230 = pneg %p49
        $region34: #{tpu_custom_call.1} parent=31 // pred_check_branch
          %232 = sbr.rel (%p230) target = $region36
        $region35: #{tpu_custom_call.1} parent=31 // pred_region
          %s233 = smul.u32 8, %s23
          %s234 = ssub.s32 17, %s233
          %p235 = scmp.lt.s32.totalorder %s234, 8
          %s236 = scalar_select %p235, %s234, 8
          %s237 = smul.u32 8, %s236
          %s238 = smul.u32 %s237, 3
          %p239 = scmp.lt.s32.totalorder %s22, 1
          %s240 = scalar_select %p239, %s22, 1
          %p241 = scmp.lt.s32.totalorder %s233, 16
          %s242 = scalar_select %p241, %s233, 16
          %s243 = smul.addr %s242, 3
          %s244 = smul.addr %s240, 51
          %s245 = sadd.s32 %s243, %s244
          %s246 = smul.addr %s245, 8
          %s247 = scalar_lea.vmem %s0, %s246
          %s248 = smul.u32 8, %s23
          %s249 = ssub.s32 17, %s248
          %p250 = scmp.lt.s32.totalorder %s249, 8
          %s251 = scalar_select %p250, %s249, 8
          %s252 = smul.u32 8, %s251
          %s253 = smul.u32 %s252, 3
        $region36: #{tpu_custom_call.1} parent=31 // pred_fallthru
          _
        // Predicated region
        $region37: #{tpu_custom_call.1} parent=31 // pred_check
          %p254 = pneg %p81
        $region38: #{tpu_custom_call.1} parent=31 // pred_check_branch
          %256 = sbr.rel (%p254) target = $region40
        $region39: #{tpu_custom_call.1} parent=31 // pred_region
          %s257 = sadd.s32 %s23, 1
          %s258 = smul.u32 %s257, 8
          %p259 = scmp.lt.s32.totalorder %s22, 1
          %s260 = scalar_select %p259, %s22, 1
          %p261 = scmp.lt.s32.totalorder %s258, 16
          %s262 = scalar_select %p261, %s258, 16
          %s263 = smul.addr %s262, 3
          %s264 = smul.addr %s260, 51
          %s265 = sadd.s32 %s263, %s264
          %s266 = smul.addr %s265, 8
          %s267 = scalar_lea.vmem %s1, %s266
          %s268 = sadd.s32 %s23, 1
          %s269 = smul.u32 %s268, 8
        $region40: #{tpu_custom_call.1} parent=31 // pred_fallthru
          _
      $region32: #{tpu_custom_call.1} parent=5 // pred_fallthru
        _
      %p270 = scmp.le.s32.totalorder 1, %s15
      %p271 = scmp.lt.s32.totalorder %s15, 5
      %p272 = pnand %p270, %p271
      %p273 = pneg %p272
      // Predicated region
      $region41: #{tpu_custom_call.1} parent=5 // pred_check
        _
      $region42: #{tpu_custom_call.1} parent=5 // pred_check_branch
        %275 = sbr.rel (%p272) target = $region44
      $region43: #{tpu_custom_call.1} parent=5 // pred_region
        %s276 = ssub.s32 %s15, 1
        %s277 = smul.u32 8, %s25
        %s278 = ssub.s32 17, %s277
        %p279 = scmp.lt.s32.totalorder %s278, 8
        %s280 = scalar_select %p279, %s278, 8
        %s281 = smul.u32 8, %s280
        %s282 = smul.u32 %s281, 3
        %p283 = scmp.lt.s32.totalorder %s24, 1
        %s284 = scalar_select %p283, %s24, 1
        %p285 = scmp.lt.s32.totalorder %s277, 16
        %s286 = scalar_select %p285, %s277, 16
        %s287 = smul.addr %s286, 3
        %s288 = smul.addr %s284, 51
        %s289 = sadd.s32 %s287, %s288
        %s290 = smul.addr %s289, 8
        %s291 = scalar_lea.vmem %s0, %s290
        %p292 = pneg %p55
        %p293 = pneg %p52
        %s294 = sadd.s32 %s25, 1
        %s295 = smul.u32 %s294, 8
        %p296 = scmp.lt.s32.totalorder %s24, 1
        %s297 = scalar_select %p296, %s24, 1
        %p298 = scmp.lt.s32.totalorder %s295, 16
        %s299 = scalar_select %p298, %s295, 16
        %s300 = smul.addr %s299, 3
        %s301 = smul.addr %s297, 51
        %s302 = sadd.s32 %s300, %s301
        %s303 = smul.addr %s302, 8
        %s304 = scalar_lea.vmem %s1, %s303
        %p305 = pneg %p87
        %p306 = pneg %p84
        %p307 = pneg %p108
        %p308 = pneg %p105
        %p309 = pneg %p129
        %p310 = pneg %p126
        %p311 = pneg %p150
        %p312 = pneg %p147
        %p313 = pneg %p171
        %p314 = pneg %p168
        %p315 = pneg %p199
        %p316 = pneg %p196
        %s317 = sand.u32 %s186, 1
        %s318 = scalar_lea.sflag [#allocation3], %s317
        %s319 = sand.u32 %s186, 1
        %s320 = smul.addr %s319, 32
        %s321 = scalar_lea.vmem [#allocation2], %s320
        %s322 = smul.u32 8, %s25
        %s323 = ssub.s32 17, %s322
        %p324 = scmp.lt.s32.totalorder %s323, 8
        %s325 = scalar_select %p324, %s323, 8
        %s326 = smul.u32 8, %s325
        %s327 = smul.u32 %s326, 3
        %p328 = scmp.lt.s32.totalorder %s24, 1
        %s329 = scalar_select %p328, %s24, 1
        %p330 = scmp.lt.s32.totalorder %s322, 16
        %s331 = scalar_select %p330, %s322, 16
        %s332 = smul.addr %s331, 3
        %s333 = smul.addr %s329, 51
        %s334 = sadd.s32 %s332, %s333
        %s335 = smul.addr %s334, 8
        %s336 = scalar_lea.vmem %s0, %s335
        %s337 = smul.u32 8, %s25
        %s338 = ssub.s32 17, %s337
        %p339 = scmp.lt.s32.totalorder %s338, 8
        %s340 = scalar_select %p339, %s338, 8
        %s341 = smul.u32 8, %s340
        %s342 = smul.u32 %s341, 3
        %s343 = sadd.s32 %s25, 1
        %s344 = smul.u32 %s343, 8
        %p345 = scmp.lt.s32.totalorder %s24, 1
        %s346 = scalar_select %p345, %s24, 1
        %p347 = scmp.lt.s32.totalorder %s344, 16
        %s348 = scalar_select %p347, %s344, 16
        %s349 = smul.addr %s348, 3
        %s350 = smul.addr %s346, 51
        %s351 = sadd.s32 %s349, %s350
        %s352 = smul.addr %s351, 8
        %s353 = scalar_lea.vmem %s1, %s352
        %s354 = sadd.s32 %s25, 1
        %s355 = smul.u32 %s354, 8
        %s356 = smul.u32 4, %s25
        %v357 = vld [vmem:[%s336] sm:$0xff]
        %v358 = vld [vmem:[%s336 + $0x8] sm:$0xff]
        %v359 = vld [vmem:[%s336 + $0x10] sm:$0x1]
        %v360 = vld [vmem:[%s336 + $0x18] sm:$0xff]
        %v361 = vld [vmem:[%s336 + $0x20] sm:$0xff]
        %v362 = vld [vmem:[%s336 + $0x28] sm:$0x1]
        %v363 = vld [vmem:[%s336 + $0x30] sm:$0xff]
        %v364 = vld [vmem:[%s336 + $0x38] sm:$0xff]
        %v365 = vld [vmem:[%s336 + $0x40] sm:$0x1]
        %v366 = vld [vmem:[%s336 + $0x48] sm:$0xff]
        %v367 = vld [vmem:[%s336 + $0x50] sm:$0xff]
        %v368 = vld [vmem:[%s336 + $0x58] sm:$0x1]
        %v369 = vld [vmem:[%s336 + $0x60] sm:$0xff]
        %v370 = vld [vmem:[%s336 + $0x68] sm:$0xff]
        %v371 = vld [vmem:[%s336 + $0x70] sm:$0x1]
        %v372 = vld [vmem:[%s336 + $0x78] sm:$0xff]
        %v373 = vld [vmem:[%s336 + $0x80] sm:$0xff]
        %v374 = vld [vmem:[%s336 + $0x88] sm:$0x1]
        %v375 = vld [vmem:[%s336 + $0x90] sm:$0xff]
        %v376 = vld [vmem:[%s336 + $0x98] sm:$0xff]
        %v377 = vld [vmem:[%s336 + $0xa0] sm:$0x1]
        %v378 = vld [vmem:[%s336 + $0xa8] sm:$0xff]
        %v379 = vld [vmem:[%s336 + $0xb0] sm:$0xff]
        %v380 = vld [vmem:[%s336 + $0xb8] sm:$0x1]
        %v381 = vld [vmem:[%s353] sm:$0xff]
        %v382 = vld [vmem:[%s353 + $0x8] sm:$0xff]
        %v383 = vld [vmem:[%s353 + $0x10] sm:$0x1]
        %v384 = vadd.f32 %v357, %v360
        %v385 = vadd.f32 %v358, %v361
        %v386 = vadd.f32 %v359, %v362
        %v387 = vadd.f32 %v363, %v366
        %v388 = vadd.f32 %v364, %v367
        %v389 = vadd.f32 %v365, %v368
        %v390 = vadd.f32 %v369, %v372
        %v391 = vadd.f32 %v370, %v373
        %v392 = vadd.f32 %v371, %v374
        %v393 = vadd.f32 %v375, %v378
        %v394 = vadd.f32 %v376, %v379
        %v395 = vadd.f32 %v377, %v380
        %v396 = vadd.f32 %v384, %v363
        %v397 = vadd.f32 %v385, %v364
        %v398 = vadd.f32 %v386, %v365
        %v399 = vadd.f32 %v387, %v369
        %v400 = vadd.f32 %v388, %v370
        %v401 = vadd.f32 %v389, %v371
        %v402 = vadd.f32 %v390, %v375
        %v403 = vadd.f32 %v391, %v376
        %v404 = vadd.f32 %v392, %v377
        %v405 = vadd.f32 %v393, %v381
        %v406 = vadd.f32 %v394, %v382
        %v407 = vadd.f32 %v395, %v383
        %v408 = vld [vmem:[%s2] sm:$0xff]
        %v409 = vld [vmem:[%s2 + $0x8] sm:$0xff]
        %v410 = vld [vmem:[%s2 + $0x10] sm:$0xff]
        %v411 = vld [vmem:[%s2 + $0x18] sm:$0xff]
        %vm412 = vcmask 138240
        %v414 = vsel %vm412, %v408, 0
        %vm416 = vcmask 1040384
        %v418 = vsel %vm416, %v398, 0
        %420 = vmatpush.msra.mxu0 0.0
        %421 = vmatpush.msra.mxu0 0.0
        %422 = vmatpush.msra.mxu0 0.0
        %423 = vmatpush.msra.mxu0 0.0
        %424 = vmatpush.msra.mxu0 0.0
        %425 = vmatpush.msra.mxu0 0.0
        %426 = vmatpush.msra.mxu0 0.0
        %427 = vmatpush.msra.mxu0 0.0
        %428 = vmatpush.msra.mxu0 0.0
        %429 = vmatpush.msra.mxu0 0.0
        %430 = vmatpush.msra.mxu0 0.0
        %431 = vmatpush.msra.mxu0 0.0
        %432 = vmatpush.msra.mxu0 0.0
        %433 = vmatpush.msra.mxu0 %v418
        %434 = vmatpush.msra.mxu0 %v397
        %435 = vmatpush.msra.mxu0 %v396
        %436 = vmatmul.f32.gmra.mxu0 %v414
        %v437 = vpop.f32.mrf.mxu0
        %v438 = vadd.f32 0.0, %v437
        %439 = vdwg.mxu0
        %v441 = vsel %vm412, %v409, 0
        %v444 = vsel %vm416, %v401, 0
        %446 = vmatpush.msra.mxu0 0.0
        %447 = vmatpush.msra.mxu0 0.0
        %448 = vmatpush.msra.mxu0 0.0
        %449 = vmatpush.msra.mxu0 0.0
        %450 = vmatpush.msra.mxu0 0.0
        %451 = vmatpush.msra.mxu0 0.0
        %452 = vmatpush.msra.mxu0 0.0
        %453 = vmatpush.msra.mxu0 0.0
        %454 = vmatpush.msra.mxu0 0.0
        %455 = vmatpush.msra.mxu0 0.0
        %456 = vmatpush.msra.mxu0 0.0
        %457 = vmatpush.msra.mxu0 0.0
        %458 = vmatpush.msra.mxu0 0.0
        %459 = vmatpush.msra.mxu0 %v444
        %460 = vmatpush.msra.mxu0 %v400
        %461 = vmatpush.msra.mxu0 %v399
        %462 = vmatmul.f32.gmra.mxu0 %v441
        %v463 = vpop.f32.mrf.mxu0
        %v464 = vadd.f32 0.0, %v463
        %465 = vdwg.mxu0
        %v467 = vsel %vm412, %v410, 0
        %v470 = vsel %vm416, %v404, 0
        %472 = vmatpush.msra.mxu0 0.0
        %473 = vmatpush.msra.mxu0 0.0
        %474 = vmatpush.msra.mxu0 0.0
        %475 = vmatpush.msra.mxu0 0.0
        %476 = vmatpush.msra.mxu0 0.0
        %477 = vmatpush.msra.mxu0 0.0
        %478 = vmatpush.msra.mxu0 0.0
        %479 = vmatpush.msra.mxu0 0.0
        %480 = vmatpush.msra.mxu0 0.0
        %481 = vmatpush.msra.mxu0 0.0
        %482 = vmatpush.msra.mxu0 0.0
        %483 = vmatpush.msra.mxu0 0.0
        %484 = vmatpush.msra.mxu0 0.0
        %485 = vmatpush.msra.mxu0 %v470
        %486 = vmatpush.msra.mxu0 %v403
        %487 = vmatpush.msra.mxu0 %v402
        %488 = vmatmul.f32.gmra.mxu0 %v467
        %v489 = vpop.f32.mrf.mxu0
        %v490 = vadd.f32 0.0, %v489
        %491 = vdwg.mxu0
        %v493 = vsel %vm412, %v411, 0
        %v496 = vsel %vm416, %v407, 0
        %498 = vmatpush.msra.mxu0 0.0
        %499 = vmatpush.msra.mxu0 0.0
        %500 = vmatpush.msra.mxu0 0.0
        %501 = vmatpush.msra.mxu0 0.0
        %502 = vmatpush.msra.mxu0 0.0
        %503 = vmatpush.msra.mxu0 0.0
        %504 = vmatpush.msra.mxu0 0.0
        %505 = vmatpush.msra.mxu0 0.0
        %506 = vmatpush.msra.mxu0 0.0
        %507 = vmatpush.msra.mxu0 0.0
        %508 = vmatpush.msra.mxu0 0.0
        %509 = vmatpush.msra.mxu0 0.0
        %510 = vmatpush.msra.mxu0 0.0
        %511 = vmatpush.msra.mxu0 %v496
        %512 = vmatpush.msra.mxu0 %v406
        %513 = vmatpush.msra.mxu0 %v405
        %514 = vmatmul.f32.gmra.mxu0 %v493
        %v515 = vpop.f32.mrf.mxu0
        %v516 = vadd.f32 0.0, %v515
        %517 = vdwg.mxu0
        %s518 = smul.u32 %s25, 4
        %v519 = vlaneseq
        %v520 = vshrl.u32 %v519, 7
        %v521 = vstv %s518
        %v522 = vadd.s32 %v521, %v520
        %vm523 = vcmp.eq.s32.totalorder %v522, 0
        %v524 = vsel %vm523, 0.5, 0.33333334
        %v526 = vperm.slane %v524, 0
        %v527 = vperm.slane %v524, 1
        %v528 = vperm.slane %v524, 2
        %v529 = vperm.slane %v524, 3
        %v534 = vmul.f32 %v438, %v526
        %v535 = vmul.f32 %v464, %v527
        %v536 = vmul.f32 %v490, %v528
        %v537 = vmul.f32 %v516, %v529
        %v538 = vld [vmem:[%s3] sm:$0x1]
        %v539 = vperm.slane %v538, 0
        %v540 = vlaneseq
        %v541 = vshrl.u32 %v540, 7
        %543 = vset.pattern.permute.xlu0 %v541
        %544 = vperm.xlu0 %543, %v539
        %v545 = vpop.permute.xlu0 %544
        %v546 = vmul.f32 %v534, %v545
        %v547 = vmul.f32 %v535, %v545
        %v548 = vmul.f32 %v536, %v545
        %v549 = vmul.f32 %v537, %v545
        %v550 = vld [vmem:[%s4] sm:$0xf]
        %v551 = vld [vmem:[%s5] sm:$0x1]
        %v553 = vperm.slane %v551, 0
        %vm555 = vcmask 31744
        %v557 = vsel %vm555, %v546, 0
        %v560 = vsel %vm555, %v547, 0
        %v563 = vsel %vm555, %v548, 0
        %v566 = vsel %vm555, %v549, 0
        %vm568 = vcmask 1043456
        %v570 = vsel %vm568, %v550, 0
        %572 = vmatpush.msra.mxu0 0.0
        %573 = vmatpush.msra.mxu0 0.0
        %574 = vmatpush.msra.mxu0 0.0
        %575 = vmatpush.msra.mxu0 0.0
        %576 = vmatpush.msra.mxu0 0.0
        %577 = vmatpush.msra.mxu0 0.0
        %578 = vmatpush.msra.mxu0 0.0
        %579 = vmatpush.msra.mxu0 0.0
        %580 = vmatpush.msra.mxu0 0.0
        %581 = vmatpush.msra.mxu0 0.0
        %582 = vmatpush.msra.mxu0 0.0
        %583 = vmatpush.msra.mxu0 0.0
        %584 = vmatpush.msra.mxu0 0.0
        %585 = vmatpush.msra.mxu0 0.0
        %586 = vmatpush.msra.mxu0 0.0
        %587 = vmatpush.msra.mxu0 %v570
        %588 = vmatmul.f32.gmra.mxu0 %v557
        %v589 = vpop.f32.mrf.mxu0
        %v590 = vadd.f32 %v553, %v589
        %591 = vmatmul.f32.gmra.mxu0 %v560
        %v592 = vpop.f32.mrf.mxu0
        %v593 = vadd.f32 %v553, %v592
        %594 = vmatmul.f32.gmra.mxu0 %v563
        %v595 = vpop.f32.mrf.mxu0
        %v596 = vadd.f32 %v553, %v595
        %597 = vmatmul.f32.gmra.mxu0 %v566
        %v598 = vpop.f32.mrf.mxu0
        %v599 = vadd.f32 %v553, %v598
        %600 = vdwg.mxu0
        %vm601 = vcmask 64512
        %602 = vst.msk [vmem:[%s321] sm:$0xff] %vm601, %v590
        %603 = vst.msk [vmem:[%s321 + $0x8] sm:$0xff] %vm601, %v593
        %604 = vst.msk [vmem:[%s321 + $0x10] sm:$0xff] %vm601, %v596
        %605 = vst.msk [vmem:[%s321 + $0x18] sm:$0xff] %vm601, %v599
        %s606 = sand.u32 %s186, 1
        %s607 = scalar_lea.sflag [#allocation3], %s606
        %s608 = sand.u32 %s186, 1
        %s609 = smul.addr %s608, 32
        %s610 = scalar_lea.vmem [#allocation2], %s609
        // Predicated region
        $region45: #{tpu_custom_call.1} parent=43 // pred_check
          %p611 = pneg %p196
        $region46: #{tpu_custom_call.1} parent=43 // pred_check_branch
          %613 = sbr.rel (%p611) target = $region48
        $region47: #{tpu_custom_call.1} parent=43 // pred_region
          %s614 = smul.u32 4, %s25
          %616 = vsyncadd %s607, 0
          %s617 = smul.addr %s24, 8
          %s618 = sadd.s32 %s614, %s617
          %s619 = smul.addr %s618, 8
          %s620 = scalar_lea.hbm %s6, %s619
          %s621 = sshll.u32 %s610, 4
          %s622 = int_to_ptr.vmem [resolvable:$true] %s621
          %s623 = sshll.u32 %s620, 4
          %s624 = int_to_ptr.hbm [resolvable:$true] %s623
          %629 = dma.vmem_to_hbm [thread:$0]  %s622, 512, %s624, %s607, 128, 128, 8
        $region48: #{tpu_custom_call.1} parent=43 // pred_fallthru
          _
      $region44: #{tpu_custom_call.1} parent=5 // pred_fallthru
        _
      %p630 = scmp.le.s32.totalorder 2, %s15
      // Predicated region
      $region49: #{tpu_custom_call.1} parent=5 // pred_check
        %p631 = pneg %p630
      $region50: #{tpu_custom_call.1} parent=5 // pred_check_branch
        %633 = sbr.rel (%p631) target = $region52
      $region51: #{tpu_custom_call.1} parent=5 // pred_region
        %s634 = ssub.s32 %s15, 2
        // Predicated region
        $region53: #{tpu_custom_call.1} parent=51 // pred_check
          %p635 = pneg %p202
        $region54: #{tpu_custom_call.1} parent=51 // pred_check_branch
          %637 = sbr.rel (%p635) target = $region56
        $region55: #{tpu_custom_call.1} parent=51 // pred_region
          %s638 = sand.u32 %s187, 1
          %s639 = scalar_lea.sflag [#allocation3], %s638
          %s640 = sand.u32 %s187, 1
          %s641 = smul.addr %s640, 32
          %s642 = scalar_lea.vmem [#allocation2], %s641
          %644 = dma.done %s639, 512
        $region56: #{tpu_custom_call.1} parent=51 // pred_fallthru
          _
      $region52: #{tpu_custom_call.1} parent=5 // pred_fallthru
        _
    $region6: #{tpu_custom_call.1} parent=1 // loop_footer
      %s19 = sadd.s32 1, %s15
    $region7: #{tpu_custom_call.1} parent=1 // loop_footer_branch
      %14 = sbr.rel target = $region3
    $region8: #{tpu_custom_call.1} parent=1 // loop_exit
      _
    %645 = vsyncpa [#allocation3], 1
    %s646 = scalar_lea.sflag [#allocation3], 1
    %647 = vsyncpa %s646, 1

</llo_original>
